<compile_context>
chip_gen: v7x
topology: tpu7x:2x2x1
jax: 0.10.0
libtpu: 0.0.40
codegen_flags: <defaults>
</compile_context>

<pallas_src>
import jax
import jax.numpy as jnp
from jax import lax
from jax.experimental import pallas as pl
from jax.experimental.pallas import tpu as pltpu

B, T, I, H = 2, 8, 1, 32  # batch, seq_len, input_size, hidden_size


def rnn_kernel(x_ref, h0_ref, whh_ref, slab_ref, y_ref, hT_ref):
    """Full tanh-RNN recurrence + batched output projection.

    x_ref:    (B, T)   input, squeezed over I == 1
    h0_ref:   (B, H)   initial hidden state
    whh_ref:  (H, H)   hidden->hidden weight, pre-transposed (h @ whh == h @ W_hh^T)
    slab_ref: (4, H)   packed small params:
                         row 0: w_ih^T           (I == 1 -> a single (1, H) row)
                         row 1: b_ih + b_hh
                         row 2: w_out (Linear 32 -> 1 weight row)
                         row 3: b_out broadcast across H
    y_ref:    (B, T)   per-timestep outputs (single lane-oriented store)
    hT_ref:   (B, H)   final hidden state
    """
    whh = whh_ref[...]                 # (H, H) - loop-invariant MXU RHS
    wih = slab_ref[0:1, :]             # (1, H)
    bias = slab_ref[1:2, :]            # (1, H) = b_ih + b_hh
    wout = slab_ref[2:3, :]            # (1, H)
    bout = slab_ref[3:4, 0:1]          # (1, 1)

    # Hoisted input projection + bias for all timesteps (exact: I == 1 so
    # x_t @ W_ih^T == x_t * w_ih broadcast):  (B, T, 1) * (1, H) -> (B, T, H)
    inp_all = x_ref[...][:, :, None] * wih + bias

    h = h0_ref[...]                    # (B, H)
    hs = []

    # Fully unrolled recurrence: per-step serial chain is MXU dot -> VPU add -> EUP tanh.
    # whh is loop-invariant so the MXU weight push is hoisted out of the chain; hidden
    # states stay in vregs (no per-step masked VMEM stores).
    for t in range(x_ref.shape[1]):
        rec = jnp.dot(h, whh, preferred_element_type=jnp.float32)   # (B, H)
        h = jnp.tanh(inp_all[:, t, :] + rec)                        # (B, H)
        hs.append(h)

    hT_ref[...] = h.astype(hT_ref.dtype)

    # Batched output projection on the register-resident hidden states: one lane-reduce
    # over (B, T, H) and one (B, T) store instead of per-step work inside the loop.
    h_all = jnp.stack(hs, axis=1)                          # (B, T, H)
    y = jnp.sum(h_all * wout, axis=-1) + bout              # (B, T) + (1, 1) -> (B, T)
    y_ref[...] = y.astype(y_ref.dtype)


def rnn_forward(x, h_state, params):
    """PyTorch-equivalent forward.

    x:       (B, T, I)  batch_first, float32 (I == 1)
    h_state: (1, B, H)  or None
    returns: (outs (B, T, 1), h_state (1, B, H))
    """
    Bx, Tx, Ix = x.shape
    Hh = params["w_hh"].shape[0]
    if h_state is None:
        h_state = jnp.zeros((1, Bx, Hh), dtype=x.dtype)

    x_bt = x.reshape(Bx, Tx)                        # free reshape (I == 1), no transpose
    h0 = h_state[0]                                 # (B, H)
    whh = params["w_hh"].T                          # (H, H), pre-transposed

    # Pack the tiny operands into one (4, H) slab -> one DMA instead of six.
    slab = jnp.concatenate(
        [
            params["w_ih"].reshape(1, Hh),                              # w_ih^T
            (params["b_ih"] + params["b_hh"]).reshape(1, Hh),           # combined bias
            params["w_out"].reshape(1, Hh),                             # Linear weight
            jnp.broadcast_to(params["b_out"].reshape(1, 1), (1, Hh)),   # Linear bias
        ],
        axis=0,
    ).astype(x.dtype)

    vmem = pl.BlockSpec(memory_space=pltpu.MemorySpace.VMEM)
    y_bt, hT = pl.pallas_call(
        rnn_kernel,
        out_shape=(
            jax.ShapeDtypeStruct((Bx, Tx), x.dtype),
            jax.ShapeDtypeStruct((Bx, Hh), x.dtype),
        ),
        in_specs=[vmem, vmem, vmem, vmem],
        out_specs=(vmem, vmem),
    )(x_bt, h0, whh, slab)

    return y_bt.reshape(Bx, Tx, 1), hT[None, :, :]


def init_params(key):
    """Deterministic init mirroring PyTorch default shapes / uniform ranges."""
    ks = jax.random.split(key, 6)
    bound_rnn = 1.0 / jnp.sqrt(float(H))
    bound_lin = 1.0 / jnp.sqrt(float(H))
    return {
        "w_ih": jax.random.uniform(ks[0], (H, I), jnp.float32, -bound_rnn, bound_rnn),
        "w_hh": jax.random.uniform(ks[1], (H, H), jnp.float32, -bound_rnn, bound_rnn),
        "b_ih": jax.random.uniform(ks[2], (H,), jnp.float32, -bound_rnn, bound_rnn),
        "b_hh": jax.random.uniform(ks[3], (H,), jnp.float32, -bound_rnn, bound_rnn),
        "w_out": jax.random.uniform(ks[4], (1, H), jnp.float32, -bound_lin, bound_lin),
        "b_out": jax.random.uniform(ks[5], (1,), jnp.float32, -bound_lin, bound_lin),
    }


def ref_forward(x, h_state, p):
    """Pure-JAX reference (matches torch.nn.RNN + Linear semantics)."""
    if h_state is None:
        h_state = jnp.zeros((1, x.shape[0], p["w_hh"].shape[0]), dtype=x.dtype)

    def step(h, x_t):
        h_new = jnp.tanh(x_t @ p["w_ih"].T + p["b_ih"] + h @ p["w_hh"].T + p["b_hh"])
        y_t = h_new @ p["w_out"].T + p["b_out"]
        return h_new, y_t

    hT, ys = lax.scan(step, h_state[0], jnp.transpose(x, (1, 0, 2)))
    return jnp.transpose(ys, (1, 0, 2)), hT[None, :, :]


if __name__ == "__main__":
    key = jax.random.PRNGKey(0)
    k_x, k_h, k_p = jax.random.split(key, 3)

    params = init_params(k_p)
    x = jax.random.normal(k_x, (B, T, I), dtype=jnp.float32)
    h_state = jax.random.normal(k_h, (1, B, H), dtype=jnp.float32)

    fwd = jax.jit(rnn_forward)
    outs, hT = fwd(x, h_state, params)
    outs = jax.block_until_ready(outs)
    hT = jax.block_until_ready(hT)

    outs_ref, hT_ref = ref_forward(x, h_state, params)

    assert outs.shape == (B, T, 1) and hT.shape == (1, B, H)
    assert jnp.allclose(outs, outs_ref, atol=1e-5, rtol=1e-5)
    assert jnp.allclose(hT, hT_ref, atol=1e-5, rtol=1e-5)
    print("KERNEL_OK")
</pallas_src>

<mosaic_0001>
module attributes {stable_mosaic.version = 11 : i64} {
  func.func @rnn_kernel(%arg0: memref<2x8xf32, #tpu.memory_space<vmem>>, %arg1: memref<2x32xf32, #tpu.memory_space<vmem>>, %arg2: memref<32x32xf32, #tpu.memory_space<vmem>>, %arg3: memref<4x32xf32, #tpu.memory_space<vmem>>, %arg4: memref<2x8xf32, #tpu.memory_space<vmem>>, %arg5: memref<2x32xf32, #tpu.memory_space<vmem>>) attributes {dimension_semantics = [], scalar_prefetch = 0 : i64, scratch_operands = 0 : i64, tpu.core_type = #tpu.core_type<tc>} {
    %c0 = arith.constant 0 : index
    %c0_0 = arith.constant 0 : index
    %0 = vector.load %arg2[%c0, %c0_0] : memref<32x32xf32, #tpu.memory_space<vmem>>, vector<32x32xf32>
    %c0_1 = arith.constant 0 : index
    %c0_2 = arith.constant 0 : index
    %1 = vector.load %arg3[%c0_1, %c0_2] : memref<4x32xf32, #tpu.memory_space<vmem>>, vector<1x32xf32>
    %c1 = arith.constant 1 : index
    %c0_3 = arith.constant 0 : index
    %2 = vector.load %arg3[%c1, %c0_3] : memref<4x32xf32, #tpu.memory_space<vmem>>, vector<1x32xf32>
    %c2 = arith.constant 2 : index
    %c0_4 = arith.constant 0 : index
    %3 = vector.load %arg3[%c2, %c0_4] : memref<4x32xf32, #tpu.memory_space<vmem>>, vector<1x32xf32>
    %c3 = arith.constant 3 : index
    %c0_5 = arith.constant 0 : index
    %4 = vector.load %arg3[%c3, %c0_5] : memref<4x32xf32, #tpu.memory_space<vmem>>, vector<1x1xf32>
    %c0_6 = arith.constant 0 : index
    %c0_7 = arith.constant 0 : index
    %5 = vector.load %arg0[%c0_6, %c0_7] : memref<2x8xf32, #tpu.memory_space<vmem>>, vector<2x8xf32>
    %6 = vector.shape_cast %5 : vector<2x8xf32> to vector<2x8x1xf32>
    %7 = vector.shape_cast %1 : vector<1x32xf32> to vector<1x1x32xf32>
    %8 = vector.broadcast %6 : vector<2x8x1xf32> to vector<2x8x32xf32>
    %9 = vector.broadcast %7 : vector<1x1x32xf32> to vector<2x8x32xf32>
    %10 = arith.mulf %8, %9 : vector<2x8x32xf32>
    %11 = vector.shape_cast %2 : vector<1x32xf32> to vector<1x1x32xf32>
    %12 = vector.broadcast %11 : vector<1x1x32xf32> to vector<2x8x32xf32>
    %13 = arith.addf %10, %12 : vector<2x8x32xf32>
    %c0_8 = arith.constant 0 : index
    %c0_9 = arith.constant 0 : index
    %14 = vector.load %arg1[%c0_8, %c0_9] : memref<2x32xf32, #tpu.memory_space<vmem>>, vector<2x32xf32>
    %cst = arith.constant dense<0.000000e+00> : vector<2x32xf32>
    %15 = tpu.matmul %14, %0, %cst {dimension_numbers = #tpu.dot_dimension_numbers<[1], [0], [0], [1], [0, 0, 1, 1], [], []>} : vector<2x32xf32>, vector<32x32xf32>, vector<2x32xf32> -> vector<2x32xf32>
    %16 = vector.extract_strided_slice %13 {offsets = [0, 0, 0], sizes = [2, 1, 32], strides = [1, 1, 1]} : vector<2x8x32xf32> to vector<2x1x32xf32>
    %17 = vector.shape_cast %16 : vector<2x1x32xf32> to vector<2x32xf32>
    %18 = arith.addf %17, %15 : vector<2x32xf32>
    %19 = math.tanh %18 : vector<2x32xf32>
    %cst_10 = arith.constant dense<0.000000e+00> : vector<2x32xf32>
    %20 = tpu.matmul %19, %0, %cst_10 {dimension_numbers = #tpu.dot_dimension_numbers<[1], [0], [0], [1], [0, 0, 1, 1], [], []>} : vector<2x32xf32>, vector<32x32xf32>, vector<2x32xf32> -> vector<2x32xf32>
    %21 = vector.extract_strided_slice %13 {offsets = [0, 1, 0], sizes = [2, 1, 32], strides = [1, 1, 1]} : vector<2x8x32xf32> to vector<2x1x32xf32>
    %22 = vector.shape_cast %21 : vector<2x1x32xf32> to vector<2x32xf32>
    %23 = arith.addf %22, %20 : vector<2x32xf32>
    %24 = math.tanh %23 : vector<2x32xf32>
    %cst_11 = arith.constant dense<0.000000e+00> : vector<2x32xf32>
    %25 = tpu.matmul %24, %0, %cst_11 {dimension_numbers = #tpu.dot_dimension_numbers<[1], [0], [0], [1], [0, 0, 1, 1], [], []>} : vector<2x32xf32>, vector<32x32xf32>, vector<2x32xf32> -> vector<2x32xf32>
    %26 = vector.extract_strided_slice %13 {offsets = [0, 2, 0], sizes = [2, 1, 32], strides = [1, 1, 1]} : vector<2x8x32xf32> to vector<2x1x32xf32>
    %27 = vector.shape_cast %26 : vector<2x1x32xf32> to vector<2x32xf32>
    %28 = arith.addf %27, %25 : vector<2x32xf32>
    %29 = math.tanh %28 : vector<2x32xf32>
    %cst_12 = arith.constant dense<0.000000e+00> : vector<2x32xf32>
    %30 = tpu.matmul %29, %0, %cst_12 {dimension_numbers = #tpu.dot_dimension_numbers<[1], [0], [0], [1], [0, 0, 1, 1], [], []>} : vector<2x32xf32>, vector<32x32xf32>, vector<2x32xf32> -> vector<2x32xf32>
    %31 = vector.extract_strided_slice %13 {offsets = [0, 3, 0], sizes = [2, 1, 32], strides = [1, 1, 1]} : vector<2x8x32xf32> to vector<2x1x32xf32>
    %32 = vector.shape_cast %31 : vector<2x1x32xf32> to vector<2x32xf32>
    %33 = arith.addf %32, %30 : vector<2x32xf32>
    %34 = math.tanh %33 : vector<2x32xf32>
    %cst_13 = arith.constant dense<0.000000e+00> : vector<2x32xf32>
    %35 = tpu.matmul %34, %0, %cst_13 {dimension_numbers = #tpu.dot_dimension_numbers<[1], [0], [0], [1], [0, 0, 1, 1], [], []>} : vector<2x32xf32>, vector<32x32xf32>, vector<2x32xf32> -> vector<2x32xf32>
    %36 = vector.extract_strided_slice %13 {offsets = [0, 4, 0], sizes = [2, 1, 32], strides = [1, 1, 1]} : vector<2x8x32xf32> to vector<2x1x32xf32>
    %37 = vector.shape_cast %36 : vector<2x1x32xf32> to vector<2x32xf32>
    %38 = arith.addf %37, %35 : vector<2x32xf32>
    %39 = math.tanh %38 : vector<2x32xf32>
    %cst_14 = arith.constant dense<0.000000e+00> : vector<2x32xf32>
    %40 = tpu.matmul %39, %0, %cst_14 {dimension_numbers = #tpu.dot_dimension_numbers<[1], [0], [0], [1], [0, 0, 1, 1], [], []>} : vector<2x32xf32>, vector<32x32xf32>, vector<2x32xf32> -> vector<2x32xf32>
    %41 = vector.extract_strided_slice %13 {offsets = [0, 5, 0], sizes = [2, 1, 32], strides = [1, 1, 1]} : vector<2x8x32xf32> to vector<2x1x32xf32>
    %42 = vector.shape_cast %41 : vector<2x1x32xf32> to vector<2x32xf32>
    %43 = arith.addf %42, %40 : vector<2x32xf32>
    %44 = math.tanh %43 : vector<2x32xf32>
    %cst_15 = arith.constant dense<0.000000e+00> : vector<2x32xf32>
    %45 = tpu.matmul %44, %0, %cst_15 {dimension_numbers = #tpu.dot_dimension_numbers<[1], [0], [0], [1], [0, 0, 1, 1], [], []>} : vector<2x32xf32>, vector<32x32xf32>, vector<2x32xf32> -> vector<2x32xf32>
    %46 = vector.extract_strided_slice %13 {offsets = [0, 6, 0], sizes = [2, 1, 32], strides = [1, 1, 1]} : vector<2x8x32xf32> to vector<2x1x32xf32>
    %47 = vector.shape_cast %46 : vector<2x1x32xf32> to vector<2x32xf32>
    %48 = arith.addf %47, %45 : vector<2x32xf32>
    %49 = math.tanh %48 : vector<2x32xf32>
    %cst_16 = arith.constant dense<0.000000e+00> : vector<2x32xf32>
    %50 = tpu.matmul %49, %0, %cst_16 {dimension_numbers = #tpu.dot_dimension_numbers<[1], [0], [0], [1], [0, 0, 1, 1], [], []>} : vector<2x32xf32>, vector<32x32xf32>, vector<2x32xf32> -> vector<2x32xf32>
    %51 = vector.extract_strided_slice %13 {offsets = [0, 7, 0], sizes = [2, 1, 32], strides = [1, 1, 1]} : vector<2x8x32xf32> to vector<2x1x32xf32>
    %52 = vector.shape_cast %51 : vector<2x1x32xf32> to vector<2x32xf32>
    %53 = arith.addf %52, %50 : vector<2x32xf32>
    %54 = math.tanh %53 : vector<2x32xf32>
    %c0_17 = arith.constant 0 : index
    %c0_18 = arith.constant 0 : index
    %55 = vector.load %arg5[%c0_17, %c0_18] : memref<2x32xf32, #tpu.memory_space<vmem>>, vector<2x32xf32>
    tpu.vector_store %arg5[%c0_17, %c0_18], %54 {strides = array<i32>} : memref<2x32xf32, #tpu.memory_space<vmem>>, vector<2x32xf32>,
    %56 = vector.shape_cast %19 : vector<2x32xf32> to vector<2x1x32xf32>
    %57 = vector.shape_cast %24 : vector<2x32xf32> to vector<2x1x32xf32>
    %58 = vector.shape_cast %29 : vector<2x32xf32> to vector<2x1x32xf32>
    %59 = vector.shape_cast %34 : vector<2x32xf32> to vector<2x1x32xf32>
    %60 = vector.shape_cast %39 : vector<2x32xf32> to vector<2x1x32xf32>
    %61 = vector.shape_cast %44 : vector<2x32xf32> to vector<2x1x32xf32>
    %62 = vector.shape_cast %49 : vector<2x32xf32> to vector<2x1x32xf32>
    %63 = vector.shape_cast %54 : vector<2x32xf32> to vector<2x1x32xf32>
    %64 = tpu.concatenate %56, %57, %58, %59, %60, %61, %62, %63 in 1 : vector<2x1x32xf32>, vector<2x1x32xf32>, vector<2x1x32xf32>, vector<2x1x32xf32>, vector<2x1x32xf32>, vector<2x1x32xf32>, vector<2x1x32xf32>, vector<2x1x32xf32> -> vector<2x8x32xf32>
    %65 = vector.shape_cast %3 : vector<1x32xf32> to vector<1x1x32xf32>
    %66 = vector.broadcast %65 : vector<1x1x32xf32> to vector<2x8x32xf32>
    %67 = arith.mulf %64, %66 : vector<2x8x32xf32>
    %cst_19 = arith.constant dense<0.000000e+00> : vector<2x8xf32>
    %68 = vector.multi_reduction <add>, %67, %cst_19 [2] : vector<2x8x32xf32> to vector<2x8xf32>
    %69 = vector.broadcast %4 : vector<1x1xf32> to vector<2x8xf32>
    %70 = arith.addf %68, %69 : vector<2x8xf32>
    %c0_20 = arith.constant 0 : index
    %c0_21 = arith.constant 0 : index
    %71 = vector.load %arg4[%c0_20, %c0_21] : memref<2x8xf32, #tpu.memory_space<vmem>>, vector<2x8xf32>
    tpu.vector_store %arg4[%c0_20, %c0_21], %70 {strides = array<i32>} : memref<2x8xf32, #tpu.memory_space<vmem>>, vector<2x8xf32>,
    return
  }
}

</mosaic_0001>

<llo_original>
// kernel: rnn_forward.1
$region0: #{rnn_forward.1}
  #allocation0 [shape = 'u32[]', space=smem, size = 0x4, offset = 0x4, fixed_abs, tag = 'smem constant byte address 0x4 - core index']
  #allocation1 [shape = 'u32[144,128]{1,0:T(1,128)}', space=vmem, size = 0x12000, scoped, tag = 'internal scratch']
  %s0 = inlined_call_operand.vmem [shape: f32[2,8], index: 0, kind: input, shape index: {}]
  %s1 = inlined_call_operand.vmem [shape: f32[2,32], index: 1, kind: input, shape index: {}]
  %s2 = inlined_call_operand.vmem [shape: f32[32,32], index: 2, kind: input, shape index: {}]
  %s3 = inlined_call_operand.vmem [shape: f32[4,32], index: 3, kind: input, shape index: {}]
  %s4 = inlined_call_operand.hbm [shape: f32[2,8], index: 4, kind: output, shape index: {0}]
  %s5 = inlined_call_operand.hbm [shape: f32[2,32], index: 5, kind: output, shape index: {1}]
  %6 = xla_tuple %s4, %s5
  %s7 = sld [smem:[#allocation0]]
  $region34: #{rnn_forward.1} parent=0
    _
  %s9 = ssub.s32 1, %s7
  %s10 = scalar_select 0, %s9, %s7
  $region1: #{rnn_forward.1} parent=0
    #allocation2 [shape = 'u8[1024]{0}', space=vmem, size = 0x400, scoped, tag = 'output window, operand 0, single buffered']
    #allocation3 [shape = 's32[1]{0}', space=sflag, size = 0x4, scoped, tag = 'scoped memory for rnn_forward.1']
    #allocation4 [shape = 'u8[1024]{0}', space=vmem, size = 0x400, scoped, tag = 'output window, operand 1, single buffered']
    #allocation5 [shape = 's32[1]{0}', space=sflag, size = 0x4, scoped, tag = 'scoped memory for rnn_forward.1']
    %11 = vsyncpa [#allocation3], 0
    %12 = vsyncpa [#allocation5], 0
    // Predicated region
    $region2: #{rnn_forward.1} parent=1 // pred_check
      _
    $region3: #{rnn_forward.1} parent=1 // pred_check_branch
      %14 = sbr.rel (0) target = $region5
    $region4: #{rnn_forward.1} parent=1 // pred_region
      _
    $region5: #{rnn_forward.1} parent=1 // pred_fallthru
      _
    // Predicated region
    $region6: #{rnn_forward.1} parent=1 // pred_check
      _
    $region7: #{rnn_forward.1} parent=1 // pred_check_branch
      %16 = sbr.rel (0) target = $region9
    $region8: #{rnn_forward.1} parent=1 // pred_region
      _
    $region9: #{rnn_forward.1} parent=1 // pred_fallthru
      _
    // Predicated region
    $region10: #{rnn_forward.1} parent=1 // pred_check
      _
    $region11: #{rnn_forward.1} parent=1 // pred_check_branch
      %18 = sbr.rel (0) target = $region13
    $region12: #{rnn_forward.1} parent=1 // pred_region
      _
    $region13: #{rnn_forward.1} parent=1 // pred_fallthru
      _
    // Predicated region
    $region14: #{rnn_forward.1} parent=1 // pred_check
      _
    $region15: #{rnn_forward.1} parent=1 // pred_check_branch
      %20 = sbr.rel (0) target = $region17
    $region16: #{rnn_forward.1} parent=1 // pred_region
      _
    $region17: #{rnn_forward.1} parent=1 // pred_fallthru
      _
    %v21 = vld [vmem:[%s2] sm:$0xff]
    %v22 = vld [vmem:[%s2 + $0x8] sm:$0xff]
    %v23 = vld [vmem:[%s2 + $0x10] sm:$0xff]
    %v24 = vld [vmem:[%s2 + $0x18] sm:$0xff]
    %v25 = vld [vmem:[%s3] sm:$0x1]
    %v26 = vld [vmem:[%s3 + $0x1] sm:$0x1]
    %v27 = vld [vmem:[%s3 + $0x2] sm:$0x1]
    %v28 = vld [vmem:[%s3 + $0x3] sm:$0x1]
    %v29 = vld [vmem:[%s0] sm:$0x3]
    %v30 = vlaneseq
    %v31 = vshrl.u32 %v30, 7
    %v32 = vsub.s32 0, %v31
    %v33 = vrot.slane %v29, %v32
    %35 = vbcast.lane.b32.xlu0 %v33, 256
    %v36 = vpop.permute.xlu0 %35
    %v37 = vlaneseq
    %v38 = vshrl.u32 %v37, 7
    %v39 = vsub.s32 1, %v38
    %v40 = vrot.slane %v29, %v39
    %42 = vbcast.lane.b32.xlu0 %v40, 256
    %v43 = vpop.permute.xlu0 %42
    %v44 = vlaneseq
    %v45 = vshrl.u32 %v44, 7
    %v46 = vsub.s32 0, %v45
    %v47 = vrot.slane %v25, %v46
    %v48 = vmul.f32 %v36, %v47
    %v49 = vmul.f32 %v43, %v47
    %v50 = vlaneseq
    %v51 = vshrl.u32 %v50, 7
    %v52 = vsub.s32 0, %v51
    %v53 = vrot.slane %v26, %v52
    %v54 = vadd.f32 %v48, %v53
    %v55 = vadd.f32 %v49, %v53
    %v56 = vld [vmem:[%s1] sm:$0x3]
    %vm57 = vcmask 261120
    %v59 = vsel %vm57, %v56, 0
    %61 = vmatprep.subr.mxu0 0.0
    %62 = vmatpush1.msra.mxu0 %v21
    %63 = vmatprep.subr.mxu0 0.0
    %64 = vmatpush1.msra.mxu0 %v22
    %65 = vmatprep.subr.mxu0 0.0
    %66 = vmatpush1.msra.mxu0 %v23
    %67 = vmatprep.subr.mxu0 0.0
    %68 = vmatpush1.msra.mxu0 %v24
    %69 = vmatprep.subr.mxu0 0.0
    %70 = vmatpush1.msra.mxu0 0.0
    %71 = vmatprep.subr.mxu0 0.0
    %72 = vmatpush1.msra.mxu0 0.0
    %73 = vmatprep.subr.mxu0 0.0
    %74 = vmatpush1.msra.mxu0 0.0
    %75 = vmatprep.subr.mxu0 0.0
    %76 = vmatpush1.msra.mxu0 0.0
    %77 = vmatprep.subr.mxu0 0.0
    %78 = vmatpush1.msra.mxu0 0.0
    %79 = vmatprep.subr.mxu0 0.0
    %80 = vmatpush1.msra.mxu0 0.0
    %81 = vmatprep.subr.mxu0 0.0
    %82 = vmatpush1.msra.mxu0 0.0
    %83 = vmatprep.subr.mxu0 0.0
    %84 = vmatpush1.msra.mxu0 0.0
    %85 = vmatprep.subr.mxu0 0.0
    %86 = vmatpush1.msra.mxu0 0.0
    %87 = vmatprep.subr.mxu0 0.0
    %88 = vmatpush1.msra.mxu0 0.0
    %89 = vmatprep.subr.mxu0 0.0
    %90 = vmatpush1.msra.mxu0 0.0
    %91 = vmatprep.subr.mxu0 0.0
    %92 = vmatpush1.msra.mxu0 0.0
    %93 = vmatprep.subr.mxu0 0.0
    %94 = vmatpush1.msra.mxu0 0.0
    %95 = vmatprep.subr.mxu0 0.0
    %96 = vmatpush1.msra.mxu0 0.0
    %97 = vmatprep.subr.mxu0 0.0
    %98 = vmatpush1.msra.mxu0 0.0
    %99 = vmatprep.subr.mxu0 0.0
    %100 = vmatpush1.msra.mxu0 0.0
    %101 = vmatprep.subr.mxu0 0.0
    %102 = vmatpush1.msra.mxu0 0.0
    %103 = vmatprep.subr.mxu0 0.0
    %104 = vmatpush1.msra.mxu0 0.0
    %105 = vmatprep.subr.mxu0 0.0
    %106 = vmatpush1.msra.mxu0 0.0
    %107 = vmatprep.subr.mxu0 0.0
    %108 = vmatpush1.msra.mxu0 0.0
    %109 = vmatprep.subr.mxu0 0.0
    %110 = vmatpush1.msra.mxu0 0.0
    %111 = vmatprep.subr.mxu0 0.0
    %112 = vmatpush1.msra.mxu0 0.0
    %113 = vmatprep.subr.mxu0 0.0
    %114 = vmatpush1.msra.mxu0 0.0
    %115 = vmatprep.subr.mxu0 0.0
    %116 = vmatpush1.msra.mxu0 0.0
    %117 = vmatprep.subr.mxu0 0.0
    %118 = vmatpush1.msra.mxu0 0.0
    %119 = vmatprep.subr.mxu0 0.0
    %120 = vmatpush1.msra.mxu0 0.0
    %121 = vmatprep.subr.mxu0 0.0
    %122 = vmatpush1.msra.mxu0 0.0
    %123 = vmatprep.subr.mxu0 0.0
    %124 = vmatpush1.msra.mxu0 0.0
    %125 = vmatprep.mubr.f32.mxu0 0.0
    %126 = vmatmul.mubr.f32.gmra.mrb[0].mxu0 %v59
    %v127 = vpop.f32.mrb[0].mxu0
    %v128 = vadd.f32 0.0, %v127
    %v129 = vpop.f32.mrb[0].mxu0
    %130 = vdwg.mxu0
    %v132 = vrot.slane %v128, 1
    %v135 = vadd.f32 %v54, %v128
    %v136 = vadd.f32 %v55, %v132
    %v137 = vtanh.pop %v135
    %v138 = vtanh.pop %v136
    %v141 = vrot.slane %v138, 7
    %vm142 = vcmask 1041409
    %v143 = vsel %vm142, %v141, %v137
    %v144 = vsel %vm57, %v143, 0
    %146 = vmatprep.subr.mxu0 0.0
    %147 = vmatpush1.msra.mxu0 %v21
    %148 = vmatprep.subr.mxu0 0.0
    %149 = vmatpush1.msra.mxu0 %v22
    %150 = vmatprep.subr.mxu0 0.0
    %151 = vmatpush1.msra.mxu0 %v23
    %152 = vmatprep.subr.mxu0 0.0
    %153 = vmatpush1.msra.mxu0 %v24
    %154 = vmatprep.subr.mxu0 0.0
    %155 = vmatpush1.msra.mxu0 0.0
    %156 = vmatprep.subr.mxu0 0.0
    %157 = vmatpush1.msra.mxu0 0.0
    %158 = vmatprep.subr.mxu0 0.0
    %159 = vmatpush1.msra.mxu0 0.0
    %160 = vmatprep.subr.mxu0 0.0
    %161 = vmatpush1.msra.mxu0 0.0
    %162 = vmatprep.subr.mxu0 0.0
    %163 = vmatpush1.msra.mxu0 0.0
    %164 = vmatprep.subr.mxu0 0.0
    %165 = vmatpush1.msra.mxu0 0.0
    %166 = vmatprep.subr.mxu0 0.0
    %167 = vmatpush1.msra.mxu0 0.0
    %168 = vmatprep.subr.mxu0 0.0
    %169 = vmatpush1.msra.mxu0 0.0
    %170 = vmatprep.subr.mxu0 0.0
    %171 = vmatpush1.msra.mxu0 0.0
    %172 = vmatprep.subr.mxu0 0.0
    %173 = vmatpush1.msra.mxu0 0.0
    %174 = vmatprep.subr.mxu0 0.0
    %175 = vmatpush1.msra.mxu0 0.0
    %176 = vmatprep.subr.mxu0 0.0
    %177 = vmatpush1.msra.mxu0 0.0
    %178 = vmatprep.subr.mxu0 0.0
    %179 = vmatpush1.msra.mxu0 0.0
    %180 = vmatprep.subr.mxu0 0.0
    %181 = vmatpush1.msra.mxu0 0.0
    %182 = vmatprep.subr.mxu0 0.0
    %183 = vmatpush1.msra.mxu0 0.0
    %184 = vmatprep.subr.mxu0 0.0
    %185 = vmatpush1.msra.mxu0 0.0
    %186 = vmatprep.subr.mxu0 0.0
    %187 = vmatpush1.msra.mxu0 0.0
    %188 = vmatprep.subr.mxu0 0.0
    %189 = vmatpush1.msra.mxu0 0.0
    %190 = vmatprep.subr.mxu0 0.0
    %191 = vmatpush1.msra.mxu0 0.0
    %192 = vmatprep.subr.mxu0 0.0
    %193 = vmatpush1.msra.mxu0 0.0
    %194 = vmatprep.subr.mxu0 0.0
    %195 = vmatpush1.msra.mxu0 0.0
    %196 = vmatprep.subr.mxu0 0.0
    %197 = vmatpush1.msra.mxu0 0.0
    %198 = vmatprep.subr.mxu0 0.0
    %199 = vmatpush1.msra.mxu0 0.0
    %200 = vmatprep.subr.mxu0 0.0
    %201 = vmatpush1.msra.mxu0 0.0
    %202 = vmatprep.subr.mxu0 0.0
    %203 = vmatpush1.msra.mxu0 0.0
    %204 = vmatprep.subr.mxu0 0.0
    %205 = vmatpush1.msra.mxu0 0.0
    %206 = vmatprep.subr.mxu0 0.0
    %207 = vmatpush1.msra.mxu0 0.0
    %208 = vmatprep.subr.mxu0 0.0
    %209 = vmatpush1.msra.mxu0 0.0
    %210 = vmatprep.mubr.f32.mxu0 0.0
    %211 = vmatmul.mubr.f32.gmra.mrb[0].mxu0 %v144
    %v212 = vpop.f32.mrb[0].mxu0
    %v213 = vadd.f32 0.0, %v212
    %v214 = vpop.f32.mrb[0].mxu0
    %215 = vdwg.mxu0
    %v217 = vrot.slane %v213, 7
    %v220 = vadd.f32 %v54, %v217
    %v221 = vadd.f32 %v55, %v213
    %v222 = vtanh.pop %v220
    %v223 = vtanh.pop %v221
    %v226 = vrot.slane %v222, 1
    %v227 = vsel %vm142, %v223, %v226
    %v228 = vsel %vm57, %v227, 0
    %230 = vmatprep.subr.mxu0 0.0
    %231 = vmatpush1.msra.mxu0 %v21
    %232 = vmatprep.subr.mxu0 0.0
    %233 = vmatpush1.msra.mxu0 %v22
    %234 = vmatprep.subr.mxu0 0.0
    %235 = vmatpush1.msra.mxu0 %v23
    %236 = vmatprep.subr.mxu0 0.0
    %237 = vmatpush1.msra.mxu0 %v24
    %238 = vmatprep.subr.mxu0 0.0
    %239 = vmatpush1.msra.mxu0 0.0
    %240 = vmatprep.subr.mxu0 0.0
    %241 = vmatpush1.msra.mxu0 0.0
    %242 = vmatprep.subr.mxu0 0.0
    %243 = vmatpush1.msra.mxu0 0.0
    %244 = vmatprep.subr.mxu0 0.0
    %245 = vmatpush1.msra.mxu0 0.0
    %246 = vmatprep.subr.mxu0 0.0
    %247 = vmatpush1.msra.mxu0 0.0
    %248 = vmatprep.subr.mxu0 0.0
    %249 = vmatpush1.msra.mxu0 0.0
    %250 = vmatprep.subr.mxu0 0.0
    %251 = vmatpush1.msra.mxu0 0.0
    %252 = vmatprep.subr.mxu0 0.0
    %253 = vmatpush1.msra.mxu0 0.0
    %254 = vmatprep.subr.mxu0 0.0
    %255 = vmatpush1.msra.mxu0 0.0
    %256 = vmatprep.subr.mxu0 0.0
    %257 = vmatpush1.msra.mxu0 0.0
    %258 = vmatprep.subr.mxu0 0.0
    %259 = vmatpush1.msra.mxu0 0.0
    %260 = vmatprep.subr.mxu0 0.0
    %261 = vmatpush1.msra.mxu0 0.0
    %262 = vmatprep.subr.mxu0 0.0
    %263 = vmatpush1.msra.mxu0 0.0
    %264 = vmatprep.subr.mxu0 0.0
    %265 = vmatpush1.msra.mxu0 0.0
    %266 = vmatprep.subr.mxu0 0.0
    %267 = vmatpush1.msra.mxu0 0.0
    %268 = vmatprep.subr.mxu0 0.0
    %269 = vmatpush1.msra.mxu0 0.0
    %270 = vmatprep.subr.mxu0 0.0
    %271 = vmatpush1.msra.mxu0 0.0
    %272 = vmatprep.subr.mxu0 0.0
    %273 = vmatpush1.msra.mxu0 0.0
    %274 = vmatprep.subr.mxu0 0.0
    %275 = vmatpush1.msra.mxu0 0.0
    %276 = vmatprep.subr.mxu0 0.0
    %277 = vmatpush1.msra.mxu0 0.0
    %278 = vmatprep.subr.mxu0 0.0
    %279 = vmatpush1.msra.mxu0 0.0
    %280 = vmatprep.subr.mxu0 0.0
    %281 = vmatpush1.msra.mxu0 0.0
    %282 = vmatprep.subr.mxu0 0.0
    %283 = vmatpush1.msra.mxu0 0.0
    %284 = vmatprep.subr.mxu0 0.0
    %285 = vmatpush1.msra.mxu0 0.0
    %286 = vmatprep.subr.mxu0 0.0
    %287 = vmatpush1.msra.mxu0 0.0
    %288 = vmatprep.subr.mxu0 0.0
    %289 = vmatpush1.msra.mxu0 0.0
    %290 = vmatprep.subr.mxu0 0.0
    %291 = vmatpush1.msra.mxu0 0.0
    %292 = vmatprep.subr.mxu0 0.0
    %293 = vmatpush1.msra.mxu0 0.0
    %294 = vmatprep.mubr.f32.mxu0 0.0
    %295 = vmatmul.mubr.f32.gmra.mrb[0].mxu0 %v228
    %v296 = vpop.f32.mrb[0].mxu0
    %v297 = vadd.f32 0.0, %v296
    %v298 = vpop.f32.mrb[0].mxu0
    %299 = vdwg.mxu0
    %v301 = vrot.slane %v297, 6
    %v302 = vrot.slane %v297, 7
    %v305 = vadd.f32 %v54, %v301
    %v306 = vadd.f32 %v55, %v302
    %v307 = vtanh.pop %v305
    %v308 = vtanh.pop %v306
    %v311 = vrot.slane %v307, 2
    %v312 = vrot.slane %v308, 1
    %v313 = vsel %vm142, %v312, %v311
    %v314 = vsel %vm57, %v313, 0
    %316 = vmatprep.subr.mxu0 0.0
    %317 = vmatpush1.msra.mxu0 %v21
    %318 = vmatprep.subr.mxu0 0.0
    %319 = vmatpush1.msra.mxu0 %v22
    %320 = vmatprep.subr.mxu0 0.0
    %321 = vmatpush1.msra.mxu0 %v23
    %322 = vmatprep.subr.mxu0 0.0
    %323 = vmatpush1.msra.mxu0 %v24
    %324 = vmatprep.subr.mxu0 0.0
    %325 = vmatpush1.msra.mxu0 0.0
    %326 = vmatprep.subr.mxu0 0.0
    %327 = vmatpush1.msra.mxu0 0.0
    %328 = vmatprep.subr.mxu0 0.0
    %329 = vmatpush1.msra.mxu0 0.0
    %330 = vmatprep.subr.mxu0 0.0
    %331 = vmatpush1.msra.mxu0 0.0
    %332 = vmatprep.subr.mxu0 0.0
    %333 = vmatpush1.msra.mxu0 0.0
    %334 = vmatprep.subr.mxu0 0.0
    %335 = vmatpush1.msra.mxu0 0.0
    %336 = vmatprep.subr.mxu0 0.0
    %337 = vmatpush1.msra.mxu0 0.0
    %338 = vmatprep.subr.mxu0 0.0
    %339 = vmatpush1.msra.mxu0 0.0
    %340 = vmatprep.subr.mxu0 0.0
    %341 = vmatpush1.msra.mxu0 0.0
    %342 = vmatprep.subr.mxu0 0.0
    %343 = vmatpush1.msra.mxu0 0.0
    %344 = vmatprep.subr.mxu0 0.0
    %345 = vmatpush1.msra.mxu0 0.0
    %346 = vmatprep.subr.mxu0 0.0
    %347 = vmatpush1.msra.mxu0 0.0
    %348 = vmatprep.subr.mxu0 0.0
    %349 = vmatpush1.msra.mxu0 0.0
    %350 = vmatprep.subr.mxu0 0.0
    %351 = vmatpush1.msra.mxu0 0.0
    %352 = vmatprep.subr.mxu0 0.0
    %353 = vmatpush1.msra.mxu0 0.0
    %354 = vmatprep.subr.mxu0 0.0
    %355 = vmatpush1.msra.mxu0 0.0
    %356 = vmatprep.subr.mxu0 0.0
    %357 = vmatpush1.msra.mxu0 0.0
    %358 = vmatprep.subr.mxu0 0.0
    %359 = vmatpush1.msra.mxu0 0.0
    %360 = vmatprep.subr.mxu0 0.0
    %361 = vmatpush1.msra.mxu0 0.0
    %362 = vmatprep.subr.mxu0 0.0
    %363 = vmatpush1.msra.mxu0 0.0
    %364 = vmatprep.subr.mxu0 0.0
    %365 = vmatpush1.msra.mxu0 0.0
    %366 = vmatprep.subr.mxu0 0.0
    %367 = vmatpush1.msra.mxu0 0.0
    %368 = vmatprep.subr.mxu0 0.0
    %369 = vmatpush1.msra.mxu0 0.0
    %370 = vmatprep.subr.mxu0 0.0
    %371 = vmatpush1.msra.mxu0 0.0
    %372 = vmatprep.subr.mxu0 0.0
    %373 = vmatpush1.msra.mxu0 0.0
    %374 = vmatprep.subr.mxu0 0.0
    %375 = vmatpush1.msra.mxu0 0.0
    %376 = vmatprep.subr.mxu0 0.0
    %377 = vmatpush1.msra.mxu0 0.0
    %378 = vmatprep.subr.mxu0 0.0
    %379 = vmatpush1.msra.mxu0 0.0
    %380 = vmatprep.mubr.f32.mxu0 0.0
    %381 = vmatmul.mubr.f32.gmra.mrb[0].mxu0 %v314
    %v382 = vpop.f32.mrb[0].mxu0
    %v383 = vadd.f32 0.0, %v382
    %v384 = vpop.f32.mrb[0].mxu0
    %385 = vdwg.mxu0
    %v387 = vrot.slane %v383, 5
    %v388 = vrot.slane %v383, 6
    %v391 = vadd.f32 %v54, %v387
    %v392 = vadd.f32 %v55, %v388
    %v393 = vtanh.pop %v391
    %v394 = vtanh.pop %v392
    %v397 = vrot.slane %v393, 3
    %v398 = vrot.slane %v394, 2
    %v399 = vsel %vm142, %v398, %v397
    %v400 = vsel %vm57, %v399, 0
    %402 = vmatprep.subr.mxu0 0.0
    %403 = vmatpush1.msra.mxu0 %v21
    %404 = vmatprep.subr.mxu0 0.0
    %405 = vmatpush1.msra.mxu0 %v22
    %406 = vmatprep.subr.mxu0 0.0
    %407 = vmatpush1.msra.mxu0 %v23
    %408 = vmatprep.subr.mxu0 0.0
    %409 = vmatpush1.msra.mxu0 %v24
    %410 = vmatprep.subr.mxu0 0.0
    %411 = vmatpush1.msra.mxu0 0.0
    %412 = vmatprep.subr.mxu0 0.0
    %413 = vmatpush1.msra.mxu0 0.0
    %414 = vmatprep.subr.mxu0 0.0
    %415 = vmatpush1.msra.mxu0 0.0
    %416 = vmatprep.subr.mxu0 0.0
    %417 = vmatpush1.msra.mxu0 0.0
    %418 = vmatprep.subr.mxu0 0.0
    %419 = vmatpush1.msra.mxu0 0.0
    %420 = vmatprep.subr.mxu0 0.0
    %421 = vmatpush1.msra.mxu0 0.0
    %422 = vmatprep.subr.mxu0 0.0
    %423 = vmatpush1.msra.mxu0 0.0
    %424 = vmatprep.subr.mxu0 0.0
    %425 = vmatpush1.msra.mxu0 0.0
    %426 = vmatprep.subr.mxu0 0.0
    %427 = vmatpush1.msra.mxu0 0.0
    %428 = vmatprep.subr.mxu0 0.0
    %429 = vmatpush1.msra.mxu0 0.0
    %430 = vmatprep.subr.mxu0 0.0
    %431 = vmatpush1.msra.mxu0 0.0
    %432 = vmatprep.subr.mxu0 0.0
    %433 = vmatpush1.msra.mxu0 0.0
    %434 = vmatprep.subr.mxu0 0.0
    %435 = vmatpush1.msra.mxu0 0.0
    %436 = vmatprep.subr.mxu0 0.0
    %437 = vmatpush1.msra.mxu0 0.0
    %438 = vmatprep.subr.mxu0 0.0
    %439 = vmatpush1.msra.mxu0 0.0
    %440 = vmatprep.subr.mxu0 0.0
    %441 = vmatpush1.msra.mxu0 0.0
    %442 = vmatprep.subr.mxu0 0.0
    %443 = vmatpush1.msra.mxu0 0.0
    %444 = vmatprep.subr.mxu0 0.0
    %445 = vmatpush1.msra.mxu0 0.0
    %446 = vmatprep.subr.mxu0 0.0
    %447 = vmatpush1.msra.mxu0 0.0
    %448 = vmatprep.subr.mxu0 0.0
    %449 = vmatpush1.msra.mxu0 0.0
    %450 = vmatprep.subr.mxu0 0.0
    %451 = vmatpush1.msra.mxu0 0.0
    %452 = vmatprep.subr.mxu0 0.0
    %453 = vmatpush1.msra.mxu0 0.0
    %454 = vmatprep.subr.mxu0 0.0
    %455 = vmatpush1.msra.mxu0 0.0
    %456 = vmatprep.subr.mxu0 0.0
    %457 = vmatpush1.msra.mxu0 0.0
    %458 = vmatprep.subr.mxu0 0.0
    %459 = vmatpush1.msra.mxu0 0.0
    %460 = vmatprep.subr.mxu0 0.0
    %461 = vmatpush1.msra.mxu0 0.0
    %462 = vmatprep.subr.mxu0 0.0
    %463 = vmatpush1.msra.mxu0 0.0
    %464 = vmatprep.subr.mxu0 0.0
    %465 = vmatpush1.msra.mxu0 0.0
    %466 = vmatprep.mubr.f32.mxu0 0.0
    %467 = vmatmul.mubr.f32.gmra.mrb[0].mxu0 %v400
    %v468 = vpop.f32.mrb[0].mxu0
    %v469 = vadd.f32 0.0, %v468
    %v470 = vpop.f32.mrb[0].mxu0
    %471 = vdwg.mxu0
    %v473 = vrot.slane %v469, 4
    %v474 = vrot.slane %v469, 5
    %v477 = vadd.f32 %v54, %v473
    %v478 = vadd.f32 %v55, %v474
    %v479 = vtanh.pop %v477
    %v480 = vtanh.pop %v478
    %v483 = vrot.slane %v479, 4
    %v484 = vrot.slane %v480, 3
    %v485 = vsel %vm142, %v484, %v483
    %v486 = vsel %vm57, %v485, 0
    %488 = vmatprep.subr.mxu0 0.0
    %489 = vmatpush1.msra.mxu0 %v21
    %490 = vmatprep.subr.mxu0 0.0
    %491 = vmatpush1.msra.mxu0 %v22
    %492 = vmatprep.subr.mxu0 0.0
    %493 = vmatpush1.msra.mxu0 %v23
    %494 = vmatprep.subr.mxu0 0.0
    %495 = vmatpush1.msra.mxu0 %v24
    %496 = vmatprep.subr.mxu0 0.0
    %497 = vmatpush1.msra.mxu0 0.0
    %498 = vmatprep.subr.mxu0 0.0
    %499 = vmatpush1.msra.mxu0 0.0
    %500 = vmatprep.subr.mxu0 0.0
    %501 = vmatpush1.msra.mxu0 0.0
    %502 = vmatprep.subr.mxu0 0.0
    %503 = vmatpush1.msra.mxu0 0.0
    %504 = vmatprep.subr.mxu0 0.0
    %505 = vmatpush1.msra.mxu0 0.0
    %506 = vmatprep.subr.mxu0 0.0
    %507 = vmatpush1.msra.mxu0 0.0
    %508 = vmatprep.subr.mxu0 0.0
    %509 = vmatpush1.msra.mxu0 0.0
    %510 = vmatprep.subr.mxu0 0.0
    %511 = vmatpush1.msra.mxu0 0.0
    %512 = vmatprep.subr.mxu0 0.0
    %513 = vmatpush1.msra.mxu0 0.0
    %514 = vmatprep.subr.mxu0 0.0
    %515 = vmatpush1.msra.mxu0 0.0
    %516 = vmatprep.subr.mxu0 0.0
    %517 = vmatpush1.msra.mxu0 0.0
    %518 = vmatprep.subr.mxu0 0.0
    %519 = vmatpush1.msra.mxu0 0.0
    %520 = vmatprep.subr.mxu0 0.0
    %521 = vmatpush1.msra.mxu0 0.0
    %522 = vmatprep.subr.mxu0 0.0
    %523 = vmatpush1.msra.mxu0 0.0
    %524 = vmatprep.subr.mxu0 0.0
    %525 = vmatpush1.msra.mxu0 0.0
    %526 = vmatprep.subr.mxu0 0.0
    %527 = vmatpush1.msra.mxu0 0.0
    %528 = vmatprep.subr.mxu0 0.0
    %529 = vmatpush1.msra.mxu0 0.0
    %530 = vmatprep.subr.mxu0 0.0
    %531 = vmatpush1.msra.mxu0 0.0
    %532 = vmatprep.subr.mxu0 0.0
    %533 = vmatpush1.msra.mxu0 0.0
    %534 = vmatprep.subr.mxu0 0.0
    %535 = vmatpush1.msra.mxu0 0.0
    %536 = vmatprep.subr.mxu0 0.0
    %537 = vmatpush1.msra.mxu0 0.0
    %538 = vmatprep.subr.mxu0 0.0
    %539 = vmatpush1.msra.mxu0 0.0
    %540 = vmatprep.subr.mxu0 0.0
    %541 = vmatpush1.msra.mxu0 0.0
    %542 = vmatprep.subr.mxu0 0.0
    %543 = vmatpush1.msra.mxu0 0.0
    %544 = vmatprep.subr.mxu0 0.0
    %545 = vmatpush1.msra.mxu0 0.0
    %546 = vmatprep.subr.mxu0 0.0
    %547 = vmatpush1.msra.mxu0 0.0
    %548 = vmatprep.subr.mxu0 0.0
    %549 = vmatpush1.msra.mxu0 0.0
    %550 = vmatprep.subr.mxu0 0.0
    %551 = vmatpush1.msra.mxu0 0.0
    %552 = vmatprep.mubr.f32.mxu0 0.0
    %553 = vmatmul.mubr.f32.gmra.mrb[0].mxu0 %v486
    %v554 = vpop.f32.mrb[0].mxu0
    %v555 = vadd.f32 0.0, %v554
    %v556 = vpop.f32.mrb[0].mxu0
    %557 = vdwg.mxu0
    %v559 = vrot.slane %v555, 3
    %v560 = vrot.slane %v555, 4
    %v563 = vadd.f32 %v54, %v559
    %v564 = vadd.f32 %v55, %v560
    %v565 = vtanh.pop %v563
    %v566 = vtanh.pop %v564
    %v569 = vrot.slane %v565, 5
    %v570 = vrot.slane %v566, 4
    %v571 = vsel %vm142, %v570, %v569
    %v572 = vsel %vm57, %v571, 0
    %574 = vmatprep.subr.mxu0 0.0
    %575 = vmatpush1.msra.mxu0 %v21
    %576 = vmatprep.subr.mxu0 0.0
    %577 = vmatpush1.msra.mxu0 %v22
    %578 = vmatprep.subr.mxu0 0.0
    %579 = vmatpush1.msra.mxu0 %v23
    %580 = vmatprep.subr.mxu0 0.0
    %581 = vmatpush1.msra.mxu0 %v24
    %582 = vmatprep.subr.mxu0 0.0
    %583 = vmatpush1.msra.mxu0 0.0
    %584 = vmatprep.subr.mxu0 0.0
    %585 = vmatpush1.msra.mxu0 0.0
    %586 = vmatprep.subr.mxu0 0.0
    %587 = vmatpush1.msra.mxu0 0.0
    %588 = vmatprep.subr.mxu0 0.0
    %589 = vmatpush1.msra.mxu0 0.0
    %590 = vmatprep.subr.mxu0 0.0
    %591 = vmatpush1.msra.mxu0 0.0
    %592 = vmatprep.subr.mxu0 0.0
    %593 = vmatpush1.msra.mxu0 0.0
    %594 = vmatprep.subr.mxu0 0.0
    %595 = vmatpush1.msra.mxu0 0.0
    %596 = vmatprep.subr.mxu0 0.0
    %597 = vmatpush1.msra.mxu0 0.0
    %598 = vmatprep.subr.mxu0 0.0
    %599 = vmatpush1.msra.mxu0 0.0
    %600 = vmatprep.subr.mxu0 0.0
    %601 = vmatpush1.msra.mxu0 0.0
    %602 = vmatprep.subr.mxu0 0.0
    %603 = vmatpush1.msra.mxu0 0.0
    %604 = vmatprep.subr.mxu0 0.0
    %605 = vmatpush1.msra.mxu0 0.0
    %606 = vmatprep.subr.mxu0 0.0
    %607 = vmatpush1.msra.mxu0 0.0
    %608 = vmatprep.subr.mxu0 0.0
    %609 = vmatpush1.msra.mxu0 0.0
    %610 = vmatprep.subr.mxu0 0.0
    %611 = vmatpush1.msra.mxu0 0.0
    %612 = vmatprep.subr.mxu0 0.0
    %613 = vmatpush1.msra.mxu0 0.0
    %614 = vmatprep.subr.mxu0 0.0
    %615 = vmatpush1.msra.mxu0 0.0
    %616 = vmatprep.subr.mxu0 0.0
    %617 = vmatpush1.msra.mxu0 0.0
    %618 = vmatprep.subr.mxu0 0.0
    %619 = vmatpush1.msra.mxu0 0.0
    %620 = vmatprep.subr.mxu0 0.0
    %621 = vmatpush1.msra.mxu0 0.0
    %622 = vmatprep.subr.mxu0 0.0
    %623 = vmatpush1.msra.mxu0 0.0
    %624 = vmatprep.subr.mxu0 0.0
    %625 = vmatpush1.msra.mxu0 0.0
    %626 = vmatprep.subr.mxu0 0.0
    %627 = vmatpush1.msra.mxu0 0.0
    %628 = vmatprep.subr.mxu0 0.0
    %629 = vmatpush1.msra.mxu0 0.0
    %630 = vmatprep.subr.mxu0 0.0
    %631 = vmatpush1.msra.mxu0 0.0
    %632 = vmatprep.subr.mxu0 0.0
    %633 = vmatpush1.msra.mxu0 0.0
    %634 = vmatprep.subr.mxu0 0.0
    %635 = vmatpush1.msra.mxu0 0.0
    %636 = vmatprep.subr.mxu0 0.0
    %637 = vmatpush1.msra.mxu0 0.0
    %638 = vmatprep.mubr.f32.mxu0 0.0
    %639 = vmatmul.mubr.f32.gmra.mrb[0].mxu0 %v572
    %v640 = vpop.f32.mrb[0].mxu0
    %v641 = vadd.f32 0.0, %v640
    %v642 = vpop.f32.mrb[0].mxu0
    %643 = vdwg.mxu0
    %v645 = vrot.slane %v641, 2
    %v646 = vrot.slane %v641, 3
    %v649 = vadd.f32 %v54, %v645
    %v650 = vadd.f32 %v55, %v646
    %v651 = vtanh.pop %v649
    %v652 = vtanh.pop %v650
    %v655 = vrot.slane %v651, 6
    %v656 = vrot.slane %v652, 5
    %v657 = vsel %vm142, %v656, %v655
    %v658 = vsel %vm57, %v657, 0
    %660 = vmatprep.subr.mxu0 0.0
    %661 = vmatpush1.msra.mxu0 %v21
    %662 = vmatprep.subr.mxu0 0.0
    %663 = vmatpush1.msra.mxu0 %v22
    %664 = vmatprep.subr.mxu0 0.0
    %665 = vmatpush1.msra.mxu0 %v23
    %666 = vmatprep.subr.mxu0 0.0
    %667 = vmatpush1.msra.mxu0 %v24
    %668 = vmatprep.subr.mxu0 0.0
    %669 = vmatpush1.msra.mxu0 0.0
    %670 = vmatprep.subr.mxu0 0.0
    %671 = vmatpush1.msra.mxu0 0.0
    %672 = vmatprep.subr.mxu0 0.0
    %673 = vmatpush1.msra.mxu0 0.0
    %674 = vmatprep.subr.mxu0 0.0
    %675 = vmatpush1.msra.mxu0 0.0
    %676 = vmatprep.subr.mxu0 0.0
    %677 = vmatpush1.msra.mxu0 0.0
    %678 = vmatprep.subr.mxu0 0.0
    %679 = vmatpush1.msra.mxu0 0.0
    %680 = vmatprep.subr.mxu0 0.0
    %681 = vmatpush1.msra.mxu0 0.0
    %682 = vmatprep.subr.mxu0 0.0
    %683 = vmatpush1.msra.mxu0 0.0
    %684 = vmatprep.subr.mxu0 0.0
    %685 = vmatpush1.msra.mxu0 0.0
    %686 = vmatprep.subr.mxu0 0.0
    %687 = vmatpush1.msra.mxu0 0.0
    %688 = vmatprep.subr.mxu0 0.0
    %689 = vmatpush1.msra.mxu0 0.0
    %690 = vmatprep.subr.mxu0 0.0
    %691 = vmatpush1.msra.mxu0 0.0
    %692 = vmatprep.subr.mxu0 0.0
    %693 = vmatpush1.msra.mxu0 0.0
    %694 = vmatprep.subr.mxu0 0.0
    %695 = vmatpush1.msra.mxu0 0.0
    %696 = vmatprep.subr.mxu0 0.0
    %697 = vmatpush1.msra.mxu0 0.0
    %698 = vmatprep.subr.mxu0 0.0
    %699 = vmatpush1.msra.mxu0 0.0
    %700 = vmatprep.subr.mxu0 0.0
    %701 = vmatpush1.msra.mxu0 0.0
    %702 = vmatprep.subr.mxu0 0.0
    %703 = vmatpush1.msra.mxu0 0.0
    %704 = vmatprep.subr.mxu0 0.0
    %705 = vmatpush1.msra.mxu0 0.0
    %706 = vmatprep.subr.mxu0 0.0
    %707 = vmatpush1.msra.mxu0 0.0
    %708 = vmatprep.subr.mxu0 0.0
    %709 = vmatpush1.msra.mxu0 0.0
    %710 = vmatprep.subr.mxu0 0.0
    %711 = vmatpush1.msra.mxu0 0.0
    %712 = vmatprep.subr.mxu0 0.0
    %713 = vmatpush1.msra.mxu0 0.0
    %714 = vmatprep.subr.mxu0 0.0
    %715 = vmatpush1.msra.mxu0 0.0
    %716 = vmatprep.subr.mxu0 0.0
    %717 = vmatpush1.msra.mxu0 0.0
    %718 = vmatprep.subr.mxu0 0.0
    %719 = vmatpush1.msra.mxu0 0.0
    %720 = vmatprep.subr.mxu0 0.0
    %721 = vmatpush1.msra.mxu0 0.0
    %722 = vmatprep.subr.mxu0 0.0
    %723 = vmatpush1.msra.mxu0 0.0
    %724 = vmatprep.mubr.f32.mxu0 0.0
    %725 = vmatmul.mubr.f32.gmra.mrb[0].mxu0 %v658
    %v726 = vpop.f32.mrb[0].mxu0
    %v727 = vadd.f32 0.0, %v726
    %v728 = vpop.f32.mrb[0].mxu0
    %729 = vdwg.mxu0
    %v731 = vrot.slane %v727, 1
    %v732 = vrot.slane %v727, 2
    %v735 = vadd.f32 %v54, %v731
    %v736 = vadd.f32 %v55, %v732
    %v737 = vtanh.pop %v735
    %v738 = vtanh.pop %v736
    %v741 = vrot.slane %v738, 7
    %vm744 = vcmask 261127
    %745 = vst.msk [vmem:[#allocation4 - $0x7] sm:$0x80] %vm744, %v737
    %vm746 = vcmask 253952
    %747 = vst.msk [vmem:[#allocation4 + $0x1] sm:$0x1] %vm746, %v741
    %vm748 = vcmask 1040384
    %v749 = vsel %vm748, %v137, %v222
    %v750 = vsel %vm748, %v138, %v223
    %vm751 = vcmask 1041408
    %v752 = vsel %vm751, %v749, %v307
    %v753 = vsel %vm751, %v750, %v308
    %vm754 = vcmask 1042432
    %v755 = vsel %vm754, %v752, %v393
    %v756 = vsel %vm754, %v753, %v394
    %vm757 = vcmask 1043456
    %v758 = vsel %vm757, %v755, %v479
    %v759 = vsel %vm757, %v756, %v480
    %vm760 = vcmask 1044480
    %v761 = vsel %vm760, %v758, %v565
    %v762 = vsel %vm760, %v759, %v566
    %vm763 = vcmask 1045504
    %v764 = vsel %vm763, %v761, %v651
    %v765 = vsel %vm763, %v762, %v652
    %vm766 = vcmask 1046528
    %v767 = vsel %vm766, %v764, %v737
    %v768 = vsel %vm766, %v765, %v738
    %v769 = vlaneseq
    %v770 = vshrl.u32 %v769, 7
    %v771 = vsub.s32 0, %v770
    %v772 = vrot.slane %v27, %v771
    %v773 = vmul.f32 %v767, %v772
    %v774 = vmul.f32 %v768, %v772
    %v775 = vsel %vm57, %v773, 0.0
    %776 = vadd.xlane.f32.xlu0 %v775
    %v777 = vpop.xlane.xlu0 %776
    %v778 = vsel %vm57, %v774, 0.0
    %779 = vadd.xlane.f32.xlu0 %v778
    %v780 = vpop.xlane.xlu0 %779
    %s782 = vtos %v28
    %v783 = vstv %s782
    %v785 = vadd.f32 %v777, %v783
    %v786 = vadd.f32 %v780, %v783
    %v789 = vlaneseq
    %v790 = vand.u32 %v789, 127
    %v791 = vlaneseq
    %v792 = vshrl.u32 %v791, 7
    %v793 = vsub.s32 %v790, %v792
    %v794 = vrot.slane %v785, %v793
    %v795 = vlaneseq
    %v796 = vshrl.u32 %v795, 7
    %v797 = vsub.s32 %v790, %v796
    %v798 = vrot.slane %v786, %v797
    %v799 = vsel %vm142, %v798, %v794
    %vm801 = vcmask 58368
    %802 = vst.msk [vmem:[#allocation2] sm:$0x3] %vm801, %v799
    // Predicated region
    $region18: #{rnn_forward.1} parent=1 // pred_check
      _
    $region19: #{rnn_forward.1} parent=1 // pred_check_branch
      %804 = sbr.rel (0) target = $region21
    $region20: #{rnn_forward.1} parent=1 // pred_region
      %s806 = ssub.s32 32, 32
      %807 = vsyncadd [#allocation3], %s806
      %s809 = sshll.u32 [#allocation2], 4
      %s810 = int_to_ptr.vmem [resolvable:$true] %s809
      %812 = dma.vmem_to_hbm [thread:$0]  %s810, 32, %s4, [#allocation3]
    $region21: #{rnn_forward.1} parent=1 // pred_fallthru
      _
    // Predicated region
    $region22: #{rnn_forward.1} parent=1 // pred_check
      _
    $region23: #{rnn_forward.1} parent=1 // pred_check_branch
      %814 = sbr.rel (0) target = $region25
    $region24: #{rnn_forward.1} parent=1 // pred_region
      %s816 = ssub.s32 32, 32
      %817 = vsyncadd [#allocation5], %s816
      %s819 = sshll.u32 [#allocation4], 4
      %s820 = int_to_ptr.vmem [resolvable:$true] %s819
      %822 = dma.vmem_to_hbm [thread:$0]  %s820, 32, %s5, [#allocation5]
    $region25: #{rnn_forward.1} parent=1 // pred_fallthru
      _
    // Predicated region
    $region26: #{rnn_forward.1} parent=1 // pred_check
      _
    $region27: #{rnn_forward.1} parent=1 // pred_check_branch
      %824 = sbr.rel (0) target = $region29
    $region28: #{rnn_forward.1} parent=1 // pred_region
      %825 = dma.done [#allocation3], 32
    $region29: #{rnn_forward.1} parent=1 // pred_fallthru
      _
    // Predicated region
    $region30: #{rnn_forward.1} parent=1 // pred_check
      _
    $region31: #{rnn_forward.1} parent=1 // pred_check_branch
      %827 = sbr.rel (0) target = $region33
    $region32: #{rnn_forward.1} parent=1 // pred_region
      %828 = dma.done [#allocation5], 32
    $region33: #{rnn_forward.1} parent=1 // pred_fallthru
      _
    %829 = vsyncpa [#allocation3], 1
    %830 = vsyncpa [#allocation5], 1

</llo_original>
